<compile_context>
chip_gen: v6e
topology: v6e:2x2x1
jax: 0.10.0
libtpu: 0.0.40
codegen_flags: <defaults>
</compile_context>

<pallas_src>
import functools
import math

import jax
import jax.numpy as jnp
from jax.experimental import pallas as pl
from jax.experimental.pallas import tpu as pltpu


def _round_up(x, m):
    return ((x + m - 1) // m) * m


def _silu(x):
    return x * jax.nn.sigmoid(x)


def _equivariant_update_kernel(
    row_ref,      # (TE, 1)  int32 : edge source node index (sublane oriented)
    z1t_ref,      # (H, TE)  mxu dtype : W1 @ [h[row], h[col], edge_attr]^T (no bias)
    slab_ref,     # (8, TE)  f32 : rows 0-2 coord_diff xyz, 3 edge_mask, 4 valid
    b1_ref,       # (H, 1)   f32
    w2t_ref,      # (H, H)   mxu dtype (transposed: h2^T = W2^T @ h1^T)
    b2_ref,       # (H, 1)   f32
    w3_ref,       # (H, 1)   f32
    out_ref,      # (1, 4, Np) f32 : per-shard accumulator (rows 0-2 sum, row 3 count)
    *,
    use_tanh,
    coords_range,
    mxu_dtype,
):
    f32 = jnp.float32
    e = pl.program_id(1)   # edge-tile axis (reduction, "arbitrary")

    # ---- per-edge coord MLP, transposed layout (edges live on lanes) ----
    h1 = _silu(z1t_ref[...].astype(f32) + b1_ref[...])                  # (H, TE)
    h2 = jnp.dot(w2t_ref[...], h1.astype(mxu_dtype),
                 preferred_element_type=f32) + b2_ref[...]
    h2 = _silu(h2)                                                       # (H, TE)

    # hidden -> 1 projection OFF the MXU: VPU multiply + sublane reduce (XLU).
    m = jnp.sum(h2 * w3_ref[...], axis=0, keepdims=True)                 # (1, TE)
    if use_tanh:
        m = jnp.tanh(m) * coords_range

    # Fold the edge mask into the per-edge scalar, then scale coord_diff.
    m = m * slab_ref[3:4, :]                                             # (1, TE)
    trans = slab_ref[0:3, :] * m                                         # (3, TE)
    rhs = jnp.concatenate([trans, slab_ref[4:5, :]], axis=0)             # (4, TE)

    # ---- lane-dense segment-sum scatter: (4, TE) @ (TE, Np) -> (4, Np) ----
    n_pad = out_ref.shape[-1]
    te = row_ref.shape[0]
    node_ids = jax.lax.broadcasted_iota(jnp.int32, (te, n_pad), 1)
    onehot = (node_ids == row_ref[...]).astype(mxu_dtype)                # (TE, Np)
    contrib = jnp.dot(rhs.astype(mxu_dtype), onehot,
                      preferred_element_type=f32)                        # (4, Np)

    @pl.when(e == 0)
    def _init():
        out_ref[0, :, :] = contrib

    @pl.when(e != 0)
    def _accumulate():
        out_ref[0, :, :] = out_ref[0, :, :] + contrib


def _vmem_capacity_bytes():
    try:
        cap = int(pltpu.get_tpu_info().vmem_capacity_bytes)
        if cap > 0:
            return cap
    except Exception:
        pass
    return 64 * 1024 * 1024   # conservative fallback (v7x per-TensorCore VMEM)


def equivariant_update(
    h, coord, edge_index, coord_diff, edge_attr, node_mask, edge_mask, params,
    *, use_tanh=False, coords_range=10.0, normalization_factor=100.0,
    aggregation_method="sum", edge_tile=None, mxu_dtype=jnp.bfloat16,
    num_edge_shards=2, z1_buffers=None,
):
    """Forward pass of EquivariantUpdate.

    Node-scale W1 projections + per-edge gathers are glue in the wrapper; the
    per-edge MLP, masking and lane-dense one-hot segment-sum run in an
    edge-tiled Pallas kernel whose resident output block is the accumulator.
    A tiny XLA epilogue combines edge shards and applies the coordinate
    update / node mask."""
    f32 = jnp.float32
    md = mxu_dtype
    row, col = edge_index
    N = int(coord.shape[0])
    E = int(row.shape[0])
    hidden = int(params["w2"].shape[0])
    d = int(params["w1"].shape[0]) - 2 * hidden

    h = h.astype(f32)
    coord = coord.astype(f32)
    coord_diff = coord_diff.astype(f32)
    edge_mask_row = (jnp.ones((1, E), f32) if edge_mask is None
                     else edge_mask.astype(f32).reshape(1, E))
    if edge_attr is None and d > 0:
        edge_attr = jnp.zeros((E, d), f32)

    # --- W1 split: transposed node-side projections (N-scale, plain XLA) ---
    w1 = params["w1"].astype(f32)
    w1_r, w1_c, w1_e = w1[:hidden], w1[hidden:2 * hidden], w1[2 * hidden:]
    pre_r_t = jnp.dot(w1_r.T.astype(md), h.T.astype(md),
                      preferred_element_type=f32)                       # (H, N)
    pre_c_t = jnp.dot(w1_c.T.astype(md), h.T.astype(md),
                      preferred_element_type=f32)                       # (H, N)
    z1_t = pre_r_t[:, row] + pre_c_t[:, col]                            # (H, E)
    if d > 0:
        z1_t = z1_t + jnp.dot(w1_e.T.astype(md), edge_attr.astype(f32).T.astype(md),
                              preferred_element_type=f32)
    # b1 is added exactly once, inside the kernel.

    # --- chip-aware tiling (v7x: 64 MiB VMEM / 2 TCs; v5e/v6e: 128 MiB) ---
    vmem_cap = _vmem_capacity_bytes()
    vmem_limit = min(max(32 * 1024 * 1024, (3 * vmem_cap) // 4), 64 * 1024 * 1024)
    N_pad = _round_up(max(N, 1), 128)            # node axis lives on lanes
    if edge_tile is None:
        edge_tile = 2048 if vmem_cap >= 100 * 1024 * 1024 else 512
    TE = min(_round_up(edge_tile, 128), _round_up(E, 128))
    onehot_bytes = 4 + jnp.dtype(md).itemsize    # int32 iota + one-hot intermediates
    while TE > 128 and TE * N_pad * onehot_bytes > vmem_limit // 4:
        TE //= 2

    total_tiles = max(1, -(-E // TE))
    n_shards = (num_edge_shards
                if (num_edge_shards and num_edge_shards > 1
                    and total_tiles >= num_edge_shards) else 1)
    tiles_per_shard = -(-total_tiles // n_shards)
    E_pad = n_shards * tiles_per_shard * TE
    pe = E_pad - E

    # --- pack per-edge streams (lane-dense) ---
    row_t = jnp.pad(row.astype(jnp.int32), (0, pe)).reshape(E_pad, 1)   # (E_pad, 1)
    z1_p = jnp.pad(z1_t, ((0, 0), (0, pe))).astype(md)                  # (H, E_pad)
    slab = jnp.concatenate(
        [coord_diff.T, edge_mask_row, jnp.ones((1, E), f32)], axis=0)   # (5, E)
    slab_p = jnp.pad(slab, ((0, 3), (0, pe)))                           # (8, E_pad)

    b1c = params["b1"].astype(f32).reshape(hidden, 1)
    w2t = params["w2"].T.astype(md)
    b2c = params["b2"].astype(f32).reshape(hidden, 1)
    w3c = params["w3"].astype(f32).reshape(hidden, 1)

    T = tiles_per_shard
    edge_map = lambda s, e: (0, s * T + e)       # edge-tiled, lane axis
    row_map = lambda s, e: (s * T + e, 0)        # edge-tiled, sublane axis
    cst = lambda s, e: (0, 0)                    # resident weights

    z1_kwargs = {}
    if z1_buffers is not None and z1_buffers != 2:
        z1_kwargs = dict(pipeline_mode=pl.Buffered(z1_buffers))

    in_specs = [
        pl.BlockSpec((TE, 1), row_map),                    # row indices
        pl.BlockSpec((hidden, TE), edge_map, **z1_kwargs), # z1^T (bf16 stream)
        pl.BlockSpec((8, TE), edge_map),                   # packed slab
        pl.BlockSpec((hidden, 1), cst),                    # b1
        pl.BlockSpec((hidden, hidden), cst),               # w2^T
        pl.BlockSpec((hidden, 1), cst),                    # b2
        pl.BlockSpec((hidden, 1), cst),                    # w3
    ]
    out_spec = pl.BlockSpec((1, 4, N_pad), lambda s, e: (s, 0, 0))

    kernel = functools.partial(
        _equivariant_update_kernel,
        use_tanh=use_tanh, coords_range=coords_range, mxu_dtype=md)

    args = (row_t, z1_p, slab_p, b1c, w2t, b2c, w3c)
    flops = (2 * E_pad * hidden * hidden          # w2 matmul
             + 2 * E_pad * hidden                 # w3 projection (VPU/XLU)
             + 2 * 4 * E_pad * N_pad)             # scatter matmul
    transcend = 2 * E_pad * hidden + (E_pad if use_tanh else 0)
    bytes_accessed = (sum(int(a.size) * a.dtype.itemsize for a in args)
                      + n_shards * 4 * N_pad * 4)

    acc = pl.pallas_call(
        kernel,
        out_shape=jax.ShapeDtypeStruct((n_shards, 4, N_pad), f32),
        grid_spec=pltpu.PrefetchScalarGridSpec(
            num_scalar_prefetch=0,
            grid=(n_shards, tiles_per_shard),
            in_specs=in_specs,
            out_specs=out_spec),
        compiler_params=pltpu.CompilerParams(
            dimension_semantics=("parallel", "arbitrary"),
            vmem_limit_bytes=int(vmem_limit)),
        cost_estimate=pl.CostEstimate(
            flops=int(flops),
            transcendentals=int(transcend),
            bytes_accessed=int(bytes_accessed)),
    )(*args)

    # --- tiny XLA epilogue: combine shards, normalize, coord update, mask ---
    acc = acc[0] if n_shards == 1 else acc.sum(axis=0)                  # (4, Np)
    agg = acc[:3, :N].T                                                  # (N, 3)
    if aggregation_method == "sum":
        agg = agg * (1.0 / normalization_factor)
    elif aggregation_method == "mean":
        cnt = acc[3, :N].reshape(N, 1)
        agg = agg / jnp.where(cnt == 0.0, 1.0, cnt)
    out = coord + agg
    if node_mask is not None:
        out = out * node_mask.astype(f32).reshape(N, 1)
    return out


def init_params(key, hidden_nf, edges_in_d):
    """Parameter init matching the PyTorch module's shapes.  Linear layers use
    PyTorch's default uniform(-1/sqrt(fan_in), ...); the final hidden_nf->1
    layer is xavier_uniform with gain=0.001 (no bias).  Weights stored (in, out)."""
    input_edge = hidden_nf * 2 + edges_in_d
    k1, k2, k3, k4, k5 = jax.random.split(key, 5)

    def linear(kw, kb, fan_in, fan_out):
        bound = 1.0 / math.sqrt(fan_in)
        w = jax.random.uniform(kw, (fan_in, fan_out), jnp.float32, -bound, bound)
        b = jax.random.uniform(kb, (1, fan_out), jnp.float32, -bound, bound)
        return w, b

    w1, b1 = linear(k1, k2, input_edge, hidden_nf)
    w2, b2 = linear(k3, k4, hidden_nf, hidden_nf)

    gain = 0.001
    xav = gain * math.sqrt(6.0 / (hidden_nf + 1))
    w3 = jax.random.uniform(k5, (hidden_nf, 1), jnp.float32, -xav, xav)

    return {"w1": w1, "b1": b1, "w2": w2, "b2": b2, "w3": w3}


def _reference(h, coord, edge_index, coord_diff, edge_attr, node_mask, edge_mask,
               params, use_tanh, coords_range, normalization_factor,
               aggregation_method):
    row, col = edge_index
    x = jnp.concatenate([h[row], h[col], edge_attr], axis=1)
    h1 = jax.nn.silu(x @ params["w1"] + params["b1"])
    h2 = jax.nn.silu(h1 @ params["w2"] + params["b2"])
    m = h2 @ params["w3"]
    if use_tanh:
        m = jnp.tanh(m) * coords_range
    trans = coord_diff * m * edge_mask
    agg = jax.ops.segment_sum(trans, row, num_segments=coord.shape[0])
    if aggregation_method == "sum":
        agg = agg / normalization_factor
    elif aggregation_method == "mean":
        norm = jax.ops.segment_sum(jnp.ones_like(trans), row,
                                   num_segments=coord.shape[0])
        norm = jnp.where(norm == 0.0, 1.0, norm)
        agg = agg / norm
    return (coord + agg) * node_mask


if __name__ == "__main__":
    hidden_nf = 32
    edges_in_d = 1

    key = jax.random.PRNGKey(0)
    kp, kdata = jax.random.split(key)
    params = init_params(kp, hidden_nf, edges_in_d)

    def make_inputs(k, N, E):
        kh, kc, kd, ka, kr, kc2, km, kn = jax.random.split(k, 8)
        h = jax.random.normal(kh, (N, hidden_nf), jnp.float32)
        coord = jax.random.normal(kc, (N, 3), jnp.float32)
        row = jax.random.randint(kr, (E,), 0, N, jnp.int32)
        col = jax.random.randint(kc2, (E,), 0, N, jnp.int32)
        coord_diff = jax.random.normal(kd, (E, 3), jnp.float32)
        edge_attr = jax.random.normal(ka, (E, edges_in_d), jnp.float32)
        edge_mask = (jax.random.uniform(km, (E, 1)) > 0.2).astype(jnp.float32)
        node_mask = (jax.random.uniform(kn, (N, 1)) > 0.1).astype(jnp.float32)
        return h, coord, (row, col), coord_diff, edge_attr, node_mask, edge_mask

    def run_and_check(name, inputs, mxu_dtype, aggregation_method, use_tanh, tol,
                      **kw):
        h, coord, ei, cd, ea, nm, em = inputs
        out = equivariant_update(
            h, coord, ei, cd, ea, nm, em, params,
            use_tanh=use_tanh, coords_range=10.0, normalization_factor=100.0,
            aggregation_method=aggregation_method, mxu_dtype=mxu_dtype, **kw)
        out = jax.block_until_ready(out)
        ref = _reference(h, coord, ei, cd, ea, nm, em, params, use_tanh, 10.0,
                         100.0, aggregation_method)
        assert out.shape == coord.shape, f"{name}: bad shape {out.shape}"
        err = float(jnp.max(jnp.abs(out - ref)))
        assert jnp.allclose(out, ref, atol=tol, rtol=tol), (
            f"{name}: mismatch vs reference (max abs err {err:.2e})")

    # Small shapes consistent with the module.
    small = make_inputs(jax.random.fold_in(kdata, 0), 8, 16)
    run_and_check("bf16/sum", small, jnp.bfloat16, "sum", False, 5e-3)
    run_and_check("f32/sum", small, jnp.float32, "sum", False, 1e-4)
    run_and_check("f32/mean+tanh", small, jnp.float32, "mean", True, 1e-4)

    # Multi-tile + 2-way edge sharding (exercises accumulate / shard-combine /
    # padding paths).
    big = make_inputs(jax.random.fold_in(kdata, 1), 40, 300)
    run_and_check("f32/mean/sharded", big, jnp.float32, "mean", False, 1e-4,
                  edge_tile=128, num_edge_shards=2)
    run_and_check("bf16/sum+tanh/sharded", big, jnp.bfloat16, "sum", True, 5e-3,
                  edge_tile=128, num_edge_shards=2)

    # TODO(synk): assert_correctly_masked (debug assertion in the PyTorch code)
    # is not replicated inside the kernel.
    print("KERNEL_OK")
</pallas_src>

<mosaic_0001>
module attributes {stable_mosaic.version = 11 : i64} {
  func.func @_equivariant_update_kernel(%arg0: i32, %arg1: i32, %arg2: memref<128x1xi32, #tpu.memory_space<vmem>>, %arg3: memref<32x128xbf16, #tpu.memory_space<vmem>>, %arg4: memref<8x128xf32, #tpu.memory_space<vmem>>, %arg5: memref<32x1xf32, #tpu.memory_space<vmem>>, %arg6: memref<32x32xbf16, #tpu.memory_space<vmem>>, %arg7: memref<32x1xf32, #tpu.memory_space<vmem>>, %arg8: memref<32x1xf32, #tpu.memory_space<vmem>>, %arg9: memref<1x4x128xf32, #tpu.memory_space<vmem>>) attributes {dimension_semantics = [#tpu.dimension_semantics<parallel>, #tpu.dimension_semantics<arbitrary>], iteration_bounds = array<i64: 1, 1>, scalar_prefetch = 0 : i64, scratch_operands = 0 : i64, tpu.core_type = #tpu.core_type<tc>, window_params = [{transform_indices = @transform_0, window_bounds = array<i64: 128, 1>}, {transform_indices = @transform_1, window_bounds = array<i64: 32, 128>}, {transform_indices = @transform_2, window_bounds = array<i64: 8, 128>}, {pipeline_mode = #tpu.pipeline_mode<synchronous>, transform_indices = @transform_3, window_bounds = array<i64: 32, 1>}, {pipeline_mode = #tpu.pipeline_mode<synchronous>, transform_indices = @transform_4, window_bounds = array<i64: 32, 32>}, {pipeline_mode = #tpu.pipeline_mode<synchronous>, transform_indices = @transform_5, window_bounds = array<i64: 32, 1>}, {pipeline_mode = #tpu.pipeline_mode<synchronous>, transform_indices = @transform_6, window_bounds = array<i64: 32, 1>}, {transform_indices = @transform_7, window_bounds = array<i64: 1, 4, 128>}]} {
    %c0 = arith.constant 0 : index
    %c0_0 = arith.constant 0 : index
    %0 = vector.load %arg3[%c0, %c0_0] : memref<32x128xbf16, #tpu.memory_space<vmem>>, vector<32x128xbf16>
    %1 = arith.extf %0 : vector<32x128xbf16> to vector<32x128xf32>
    %c0_1 = arith.constant 0 : index
    %c0_2 = arith.constant 0 : index
    %2 = vector.load %arg5[%c0_1, %c0_2] : memref<32x1xf32, #tpu.memory_space<vmem>>, vector<32x1xf32>
    %3 = vector.broadcast %2 : vector<32x1xf32> to vector<32x128xf32>
    %4 = arith.addf %1, %3 : vector<32x128xf32>
    %5 = arith.negf %4 : vector<32x128xf32>
    %6 = math.exp %5 : vector<32x128xf32>
    %cst = arith.constant 1.000000e+00 : f32
    %7 = vector.broadcast %cst : f32 to vector<32x128xf32>
    %8 = arith.addf %7, %6 : vector<32x128xf32>
    %9 = arith.divf %7, %8 : vector<32x128xf32>
    %10 = arith.mulf %4, %9 : vector<32x128xf32>
    %c0_3 = arith.constant 0 : index
    %c0_4 = arith.constant 0 : index
    %11 = vector.load %arg6[%c0_3, %c0_4] : memref<32x32xbf16, #tpu.memory_space<vmem>>, vector<32x32xbf16>
    %12 = arith.truncf %10 : vector<32x128xf32> to vector<32x128xbf16>
    %cst_5 = arith.constant dense<0.000000e+00> : vector<32x128xf32>
    %13 = tpu.matmul %11, %12, %cst_5 {dimension_numbers = #tpu.dot_dimension_numbers<[1], [0], [0], [1], [0, 0, 1, 1], [], []>} : vector<32x32xbf16>, vector<32x128xbf16>, vector<32x128xf32> -> vector<32x128xf32>
    %c0_6 = arith.constant 0 : index
    %c0_7 = arith.constant 0 : index
    %14 = vector.load %arg7[%c0_6, %c0_7] : memref<32x1xf32, #tpu.memory_space<vmem>>, vector<32x1xf32>
    %15 = vector.broadcast %14 : vector<32x1xf32> to vector<32x128xf32>
    %16 = arith.addf %13, %15 : vector<32x128xf32>
    %17 = arith.negf %16 : vector<32x128xf32>
    %18 = math.exp %17 : vector<32x128xf32>
    %cst_8 = arith.constant 1.000000e+00 : f32
    %19 = vector.broadcast %cst_8 : f32 to vector<32x128xf32>
    %20 = arith.addf %19, %18 : vector<32x128xf32>
    %21 = arith.divf %19, %20 : vector<32x128xf32>
    %22 = arith.mulf %16, %21 : vector<32x128xf32>
    %c0_9 = arith.constant 0 : index
    %c0_10 = arith.constant 0 : index
    %23 = vector.load %arg8[%c0_9, %c0_10] : memref<32x1xf32, #tpu.memory_space<vmem>>, vector<32x1xf32>
    %24 = vector.broadcast %23 : vector<32x1xf32> to vector<32x128xf32>
    %25 = arith.mulf %22, %24 : vector<32x128xf32>
    %cst_11 = arith.constant dense<0.000000e+00> : vector<128xf32>
    %26 = vector.multi_reduction <add>, %25, %cst_11 [0] : vector<32x128xf32> to vector<128xf32>
    %27 = vector.shape_cast %26 : vector<128xf32> to vector<1x128xf32>
    %c3 = arith.constant 3 : index
    %c0_12 = arith.constant 0 : index
    %28 = vector.load %arg4[%c3, %c0_12] : memref<8x128xf32, #tpu.memory_space<vmem>>, vector<1x128xf32>
    %29 = arith.mulf %27, %28 : vector<1x128xf32>
    %c0_13 = arith.constant 0 : index
    %c0_14 = arith.constant 0 : index
    %30 = vector.load %arg4[%c0_13, %c0_14] : memref<8x128xf32, #tpu.memory_space<vmem>>, vector<3x128xf32>
    %31 = vector.broadcast %29 : vector<1x128xf32> to vector<3x128xf32>
    %32 = arith.mulf %30, %31 : vector<3x128xf32>
    %c4 = arith.constant 4 : index
    %c0_15 = arith.constant 0 : index
    %33 = vector.load %arg4[%c4, %c0_15] : memref<8x128xf32, #tpu.memory_space<vmem>>, vector<1x128xf32>
    %34 = tpu.concatenate %32, %33 in 0 : vector<3x128xf32>, vector<1x128xf32> -> vector<4x128xf32>
    %35 = tpu.iota {dimensions = array<i32: 1>} : vector<128x128xi32>
    %c0_16 = arith.constant 0 : index
    %c0_17 = arith.constant 0 : index
    %36 = vector.load %arg2[%c0_16, %c0_17] : memref<128x1xi32, #tpu.memory_space<vmem>>, vector<128x1xi32>
    %37 = vector.broadcast %36 : vector<128x1xi32> to vector<128x128xi32>
    %38 = arith.cmpi eq, %35, %37 : vector<128x128xi32>
    %39 = arith.extui %38 : vector<128x128xi1> to vector<128x128xi32>
    %40 = arith.sitofp %39 : vector<128x128xi32> to vector<128x128xf32>
    %41 = arith.truncf %40 : vector<128x128xf32> to vector<128x128xbf16>
    %42 = arith.truncf %34 : vector<4x128xf32> to vector<4x128xbf16>
    %cst_18 = arith.constant dense<0.000000e+00> : vector<4x128xf32>
    %43 = tpu.matmul %42, %41, %cst_18 {dimension_numbers = #tpu.dot_dimension_numbers<[1], [0], [0], [1], [0, 0, 1, 1], [], []>} : vector<4x128xbf16>, vector<128x128xbf16>, vector<4x128xf32> -> vector<4x128xf32>
    %c0_i32 = arith.constant 0 : i32
    %44 = arith.cmpi eq, %arg1, %c0_i32 : i32
    %45 = arith.extui %44 : i1 to i32
    %c0_i32_19 = arith.constant 0 : i32
    %46 = arith.cmpi ne, %45, %c0_i32_19 : i32
    scf.if %46 {
      %c0_22 = arith.constant 0 : index
      %c0_23 = arith.constant 0 : index
      %c0_24 = arith.constant 0 : index
      %50 = vector.load %arg9[%c0_22, %c0_23, %c0_24] : memref<1x4x128xf32, #tpu.memory_space<vmem>>, vector<1x4x128xf32>
      %51 = vector.shape_cast %50 : vector<1x4x128xf32> to vector<4x128xf32>
      %52 = vector.shape_cast %43 : vector<4x128xf32> to vector<1x4x128xf32>
      tpu.vector_store %arg9[%c0_22, %c0_23, %c0_24], %52 {strides = array<i32>} : memref<1x4x128xf32, #tpu.memory_space<vmem>>, vector<1x4x128xf32>,
    } else {
    }
    %c0_i32_20 = arith.constant 0 : i32
    %47 = arith.cmpi ne, %arg1, %c0_i32_20 : i32
    %48 = arith.extui %47 : i1 to i32
    %c0_i32_21 = arith.constant 0 : i32
    %49 = arith.cmpi ne, %48, %c0_i32_21 : i32
    scf.if %49 {
      %c0_22 = arith.constant 0 : index
      %c0_23 = arith.constant 0 : index
      %c0_24 = arith.constant 0 : index
      %50 = vector.load %arg9[%c0_22, %c0_23, %c0_24] : memref<1x4x128xf32, #tpu.memory_space<vmem>>, vector<1x4x128xf32>
      %51 = vector.shape_cast %50 : vector<1x4x128xf32> to vector<4x128xf32>
      %52 = arith.addf %51, %43 : vector<4x128xf32>
      %c0_25 = arith.constant 0 : index
      %c0_26 = arith.constant 0 : index
      %c0_27 = arith.constant 0 : index
      %53 = vector.load %arg9[%c0_25, %c0_26, %c0_27] : memref<1x4x128xf32, #tpu.memory_space<vmem>>, vector<1x4x128xf32>
      %54 = vector.shape_cast %53 : vector<1x4x128xf32> to vector<4x128xf32>
      %55 = vector.shape_cast %52 : vector<4x128xf32> to vector<1x4x128xf32>
      tpu.vector_store %arg9[%c0_25, %c0_26, %c0_27], %55 {strides = array<i32>} : memref<1x4x128xf32, #tpu.memory_space<vmem>>, vector<1x4x128xf32>,
    } else {
    }
    return
  }
  func.func @transform_0(%arg0: i32, %arg1: i32) -> (i32, i32) {
    %c1_i32 = arith.constant 1 : i32
    %0 = arith.muli %arg0, %c1_i32 : i32
    %1 = arith.addi %0, %arg1 : i32
    %c0_i32 = arith.constant 0 : i32
    %c0_i32_0 = arith.constant 0 : i32
    return %1, %c0_i32 : i32, i32
  }
  func.func @transform_1(%arg0: i32, %arg1: i32) -> (i32, i32) {
    %c1_i32 = arith.constant 1 : i32
    %0 = arith.muli %arg0, %c1_i32 : i32
    %1 = arith.addi %0, %arg1 : i32
    %c0_i32 = arith.constant 0 : i32
    %c0_i32_0 = arith.constant 0 : i32
    return %c0_i32, %1 : i32, i32
  }
  func.func @transform_2(%arg0: i32, %arg1: i32) -> (i32, i32) {
    %c1_i32 = arith.constant 1 : i32
    %0 = arith.muli %arg0, %c1_i32 : i32
    %1 = arith.addi %0, %arg1 : i32
    %c0_i32 = arith.constant 0 : i32
    %c0_i32_0 = arith.constant 0 : i32
    return %c0_i32, %1 : i32, i32
  }
  func.func @transform_3(%arg0: i32, %arg1: i32) -> (i32, i32) {
    %c0_i32 = arith.constant 0 : i32
    %c0_i32_0 = arith.constant 0 : i32
    %c0_i32_1 = arith.constant 0 : i32
    return %c0_i32, %c0_i32_0 : i32, i32
  }
  func.func @transform_4(%arg0: i32, %arg1: i32) -> (i32, i32) {
    %c0_i32 = arith.constant 0 : i32
    %c0_i32_0 = arith.constant 0 : i32
    %c0_i32_1 = arith.constant 0 : i32
    return %c0_i32, %c0_i32_0 : i32, i32
  }
  func.func @transform_5(%arg0: i32, %arg1: i32) -> (i32, i32) {
    %c0_i32 = arith.constant 0 : i32
    %c0_i32_0 = arith.constant 0 : i32
    %c0_i32_1 = arith.constant 0 : i32
    return %c0_i32, %c0_i32_0 : i32, i32
  }
  func.func @transform_6(%arg0: i32, %arg1: i32) -> (i32, i32) {
    %c0_i32 = arith.constant 0 : i32
    %c0_i32_0 = arith.constant 0 : i32
    %c0_i32_1 = arith.constant 0 : i32
    return %c0_i32, %c0_i32_0 : i32, i32
  }
  func.func @transform_7(%arg0: i32, %arg1: i32) -> (i32, i32, i32) {
    %c0_i32 = arith.constant 0 : i32
    %c0_i32_0 = arith.constant 0 : i32
    %c0_i32_1 = arith.constant 0 : i32
    return %arg0, %c0_i32, %c0_i32_0 : i32, i32, i32
  }
}

</mosaic_0001>

<llo_original>
// kernel: tpu_custom_call.1
$region0: #{tpu_custom_call.1}
  #allocation0 [shape = 'u32[]', space=smem, size = 0x4, offset = 0x4, fixed_abs, tag = 'smem constant byte address 0x4 - core index']
  #allocation1 [shape = 'u32[144,128]{1,0:T(1,128)}', space=vmem, size = 0x12000, scoped, tag = 'internal scratch']
  %s0 = inlined_call_operand.vmem [shape: s32[128,1], index: 0, kind: input, shape index: {}]
  %s1 = inlined_call_operand.vmem [shape: bf16[32,128], index: 1, kind: input, shape index: {}]
  %s2 = inlined_call_operand.vmem [shape: f32[8,128], index: 2, kind: input, shape index: {}]
  %s3 = inlined_call_operand.vmem [shape: f32[32,1], index: 3, kind: input, shape index: {}]
  %s4 = inlined_call_operand.vmem [shape: bf16[32,32], index: 4, kind: input, shape index: {}]
  %s5 = inlined_call_operand.vmem [shape: f32[32,1], index: 5, kind: input, shape index: {}]
  %s6 = inlined_call_operand.vmem [shape: f32[32,1], index: 6, kind: input, shape index: {}]
  %s7 = inlined_call_operand.hbm [shape: f32[1,4,128], index: 7, kind: output, shape index: {}]
  %s8 = sld [smem:[#allocation0]]
  $region46: #{tpu_custom_call.1} parent=0
    _
  %s10 = ssub.s32 1, %s8
  %s11 = scalar_select 0, %s10, %s8
  $region1: #{tpu_custom_call.1} parent=0
    #allocation2 [shape = 'u8[2048]{0}', space=vmem, size = 0x800, scoped, tag = 'output window, operand 0, single buffered']
    #allocation3 [shape = 's32[1]{0}', space=sflag, size = 0x4, scoped, tag = 'scoped memory for tpu_custom_call.1']
    %12 = vsyncpa [#allocation3], 0
    // Predicated region
    $region2: #{tpu_custom_call.1} parent=1 // pred_check
      _
    $region3: #{tpu_custom_call.1} parent=1 // pred_check_branch
      %14 = sbr.rel (0) target = $region5
    $region4: #{tpu_custom_call.1} parent=1 // pred_region
      %s15 = sadd.s32 0, 0
      %s16 = smul.u32 16, %s15
      %p17 = scmp.lt.s32.totalorder %s16, 15
      %s18 = scalar_select %p17, %s16, 15
      %s19 = smul.addr %s18, 8
      %s20 = scalar_lea.vmem %s0, %s19
      %s21 = sadd.s32 0, 0
      %s22 = smul.u32 16, %s21
    $region5: #{tpu_custom_call.1} parent=1 // pred_fallthru
      _
    // Predicated region
    $region6: #{tpu_custom_call.1} parent=1 // pred_check
      _
    $region7: #{tpu_custom_call.1} parent=1 // pred_check_branch
      %24 = sbr.rel (0) target = $region9
    $region8: #{tpu_custom_call.1} parent=1 // pred_region
      %s25 = sadd.s32 0, 0
      %p26 = scmp.lt.s32.totalorder %s25, 0
      %s27 = scalar_select %p26, %s25, 0
      %s28 = smul.addr %s27, 4
      %s29 = scalar_lea.vmem %s1, %s28
      %s30 = sadd.s32 0, 0
    $region9: #{tpu_custom_call.1} parent=1 // pred_fallthru
      _
    // Predicated region
    $region10: #{tpu_custom_call.1} parent=1 // pred_check
      _
    $region11: #{tpu_custom_call.1} parent=1 // pred_check_branch
      %32 = sbr.rel (0) target = $region13
    $region12: #{tpu_custom_call.1} parent=1 // pred_region
      %s33 = sadd.s32 0, 0
      %p34 = scmp.lt.s32.totalorder %s33, 0
      %s35 = scalar_select %p34, %s33, 0
      %s36 = smul.addr %s35, 8
      %s37 = scalar_lea.vmem %s2, %s36
      %s38 = sadd.s32 0, 0
    $region13: #{tpu_custom_call.1} parent=1 // pred_fallthru
      _
    // Predicated region
    $region14: #{tpu_custom_call.1} parent=1 // pred_check
      _
    $region15: #{tpu_custom_call.1} parent=1 // pred_check_branch
      %40 = sbr.rel (0) target = $region17
    $region16: #{tpu_custom_call.1} parent=1 // pred_region
      _
    $region17: #{tpu_custom_call.1} parent=1 // pred_fallthru
      _
    // Predicated region
    $region18: #{tpu_custom_call.1} parent=1 // pred_check
      _
    $region19: #{tpu_custom_call.1} parent=1 // pred_check_branch
      %42 = sbr.rel (0) target = $region21
    $region20: #{tpu_custom_call.1} parent=1 // pred_region
      _
    $region21: #{tpu_custom_call.1} parent=1 // pred_fallthru
      _
    // Predicated region
    $region22: #{tpu_custom_call.1} parent=1 // pred_check
      _
    $region23: #{tpu_custom_call.1} parent=1 // pred_check_branch
      %44 = sbr.rel (0) target = $region25
    $region24: #{tpu_custom_call.1} parent=1 // pred_region
      _
    $region25: #{tpu_custom_call.1} parent=1 // pred_fallthru
      _
    // Predicated region
    $region26: #{tpu_custom_call.1} parent=1 // pred_check
      _
    $region27: #{tpu_custom_call.1} parent=1 // pred_check_branch
      %46 = sbr.rel (0) target = $region29
    $region28: #{tpu_custom_call.1} parent=1 // pred_region
      _
    $region29: #{tpu_custom_call.1} parent=1 // pred_fallthru
      _
    %s47 = sadd.s32 0, 0
    %s48 = smul.u32 16, %s47
    %p49 = scmp.lt.s32.totalorder %s48, 15
    %s50 = scalar_select %p49, %s48, 15
    %s51 = smul.addr %s50, 8
    %s52 = scalar_lea.vmem %s0, %s51
    %s53 = sadd.s32 0, 0
    %p54 = scmp.lt.s32.totalorder %s53, 0
    %s55 = scalar_select %p54, %s53, 0
    %s56 = smul.addr %s55, 4
    %s57 = scalar_lea.vmem %s1, %s56
    %s58 = sadd.s32 0, 0
    %p59 = scmp.lt.s32.totalorder %s58, 0
    %s60 = scalar_select %p59, %s58, 0
    %s61 = smul.addr %s60, 8
    %s62 = scalar_lea.vmem %s2, %s61
    %s63 = sadd.s32 0, 0
    %s64 = smul.u32 16, %s63
    %p65 = scmp.lt.s32.totalorder %s64, 15
    %s66 = scalar_select %p65, %s64, 15
    %s67 = smul.addr %s66, 8
    %s68 = scalar_lea.vmem %s0, %s67
    %s69 = sadd.s32 0, 0
    %s70 = smul.u32 16, %s69
    %s71 = sadd.s32 0, 0
    %p72 = scmp.lt.s32.totalorder %s71, 0
    %s73 = scalar_select %p72, %s71, 0
    %s74 = smul.addr %s73, 4
    %s75 = scalar_lea.vmem %s1, %s74
    %s76 = sadd.s32 0, 0
    %s77 = sadd.s32 0, 0
    %p78 = scmp.lt.s32.totalorder %s77, 0
    %s79 = scalar_select %p78, %s77, 0
    %s80 = smul.addr %s79, 8
    %s81 = scalar_lea.vmem %s2, %s80
    %s82 = sadd.s32 0, 0
    %v84 = vld [vmem:[%s75] sm:$0xf]
    %v85 = vld [vmem:[%s75 + $0x4] sm:$0xf]
    %v86 = vld [vmem:[%s75 + $0x8] sm:$0xf]
    %v87 = vld [vmem:[%s75 + $0xc] sm:$0xf]
    %v88 = vunpack.c.l.bf16 %v84
    %v89 = vunpack.c.l.bf16 %v85
    %v90 = vunpack.c.l.bf16 %v86
    %v91 = vunpack.c.l.bf16 %v87
    %v92 = vld [vmem:[%s3] sm:$0xff]
    %v93 = vld [vmem:[%s3 + $0x8] sm:$0xff]
    %v94 = vld [vmem:[%s3 + $0x10] sm:$0xff]
    %v95 = vld [vmem:[%s3 + $0x18] sm:$0xff]
    %97 = vset.pattern.permute.xlu0 0
    %98 = vperm.xlu0 %97, %v92
    %v99 = vpop.permute.xlu0 %98
    %102 = vset.pattern.permute.xlu0 0
    %103 = vperm.xlu0 %102, %v93
    %v104 = vpop.permute.xlu0 %103
    %107 = vset.pattern.permute.xlu0 0
    %108 = vperm.xlu0 %107, %v94
    %v109 = vpop.permute.xlu0 %108
    %112 = vset.pattern.permute.xlu0 0
    %113 = vperm.xlu0 %112, %v95
    %v114 = vpop.permute.xlu0 %113
    %v116 = vadd.f32 %v88, %v99
    %v117 = vadd.f32 %v89, %v104
    %v118 = vadd.f32 %v90, %v109
    %v119 = vadd.f32 %v91, %v114
    %v120 = vxor.u32 %v116, 2147483648
    %v121 = vxor.u32 %v117, 2147483648
    %v122 = vxor.u32 %v118, 2147483648
    %v123 = vxor.u32 %v119, 2147483648
    %v124 = vmul.f32 %v120, 1.442695
    %v125 = vpow.pop %v124
    %v126 = vmul.f32 %v121, 1.442695
    %v127 = vpow.pop %v126
    %v128 = vmul.f32 %v122, 1.442695
    %v129 = vpow.pop %v128
    %v130 = vmul.f32 %v123, 1.442695
    %v131 = vpow.pop %v130
    %v132 = vadd.f32 %v125, 1.0
    %v133 = vadd.f32 %v127, 1.0
    %v134 = vadd.f32 %v129, 1.0
    %v135 = vadd.f32 %v131, 1.0
    %v136 = vrcp.pop %v132
    %v137 = vmul.f32 1.0, %v136
    %v138 = vrcp.pop %v133
    %v139 = vmul.f32 1.0, %v138
    %v140 = vrcp.pop %v134
    %v141 = vmul.f32 1.0, %v140
    %v142 = vrcp.pop %v135
    %v143 = vmul.f32 1.0, %v142
    %v144 = vmul.f32 %v116, %v137
    %v145 = vmul.f32 %v117, %v139
    %v146 = vmul.f32 %v118, %v141
    %v147 = vmul.f32 %v119, %v143
    %v148 = vld [vmem:[%s4] sm:$0xf]
    %v149 = vld [vmem:[%s4 + $0x4] sm:$0xf]
    %v150 = vld [vmem:[%s4 + $0x8] sm:$0xf]
    %v151 = vld [vmem:[%s4 + $0xc] sm:$0xf]
    %v152 = vpack.c.bf16 %v145, %v144
    %v153 = vpack.c.bf16 %v147, %v146
    %v154 = vld [vmem:[%s5] sm:$0xff]
    %v155 = vld [vmem:[%s5 + $0x8] sm:$0xff]
    %v156 = vld [vmem:[%s5 + $0x10] sm:$0xff]
    %v157 = vld [vmem:[%s5 + $0x18] sm:$0xff]
    %159 = vset.pattern.permute.xlu0 0
    %160 = vperm.xlu0 %159, %v154
    %v161 = vpop.permute.xlu0 %160
    %164 = vset.pattern.permute.xlu0 0
    %165 = vperm.xlu0 %164, %v155
    %v166 = vpop.permute.xlu0 %165
    %169 = vset.pattern.permute.xlu0 0
    %170 = vperm.xlu0 %169, %v156
    %v171 = vpop.permute.xlu0 %170
    %174 = vset.pattern.permute.xlu0 0
    %175 = vperm.xlu0 %174, %v157
    %v176 = vpop.permute.xlu0 %175
    %v182 = vunpack.c.l.b16 %v148
    %v183 = vunpack.c.l.b16 %v149
    %v184 = vunpack.c.l.b16 %v150
    %v185 = vunpack.c.l.b16 %v151
    %v186 = vpack.c.b16 %v183, %v182
    %v187 = vpack.c.b16 %v185, %v184
    %vm188 = vcmask 261120
    %v190 = vsel %vm188, %v186, 0
    %v193 = vsel %vm188, %v187, 0
    %195 = vmatprep.subr.bf16.mxu0 0
    %196 = vmatpush1.bf16.msra.mxu0 0
    %197 = vmatprep.subr.bf16.mxu0 0
    %198 = vmatpush1.bf16.msra.mxu0 0
    %199 = vmatprep.subr.bf16.mxu0 0
    %200 = vmatpush1.bf16.msra.mxu0 0
    %201 = vmatprep.subr.bf16.mxu0 0
    %202 = vmatpush1.bf16.msra.mxu0 0
    %203 = vmatprep.subr.bf16.mxu0 0
    %204 = vmatpush1.bf16.msra.mxu0 0
    %205 = vmatprep.subr.bf16.mxu0 0
    %206 = vmatpush1.bf16.msra.mxu0 0
    %207 = vmatprep.subr.bf16.mxu0 0
    %208 = vmatpush1.bf16.msra.mxu0 %v153
    %209 = vmatprep.subr.bf16.mxu0 0
    %210 = vmatpush1.bf16.msra.mxu0 %v152
    %211 = vmatprep.subr.bf16.mxu0 0
    %212 = vmatpush2.bf16.msra.mxu0 0
    %213 = vmatprep.subr.bf16.mxu0 0
    %214 = vmatpush2.bf16.msra.mxu0 0
    %215 = vmatprep.subr.bf16.mxu0 0
    %216 = vmatpush2.bf16.msra.mxu0 0
    %217 = vmatprep.subr.bf16.mxu0 0
    %218 = vmatpush2.bf16.msra.mxu0 0
    %219 = vmatprep.subr.bf16.mxu0 0
    %220 = vmatpush2.bf16.msra.mxu0 0
    %221 = vmatprep.subr.bf16.mxu0 0
    %222 = vmatpush2.bf16.msra.mxu0 0
    %223 = vmatprep.subr.bf16.mxu0 0
    %224 = vmatpush2.bf16.msra.mxu0 0
    %225 = vmatprep.subr.bf16.mxu0 0
    %226 = vmatpush2.bf16.msra.mxu0 0
    %227 = vmatprep.mubr.bf16.mxu0 0
    %228 = vmatmul.mubr.bf16.gmra.mxu0 %v190
    %v229 = vpop.f32.mrf.mxu0
    %v230 = vadd.f32 %v161, %v229
    %v231 = vpop.f32.mrf.mxu0
    %v232 = vpop.f32.mrf.mxu0
    %v233 = vadd.f32 %v166, %v232
    %v234 = vpop.f32.mrf.mxu0
    %235 = vmatprep.mubr.bf16.mxu0 0
    %236 = vmatmul.mubr.bf16.gmra.mxu0 %v193
    %v237 = vpop.f32.mrf.mxu0
    %v238 = vadd.f32 %v171, %v237
    %v239 = vpop.f32.mrf.mxu0
    %v240 = vpop.f32.mrf.mxu0
    %v241 = vadd.f32 %v176, %v240
    %v242 = vpop.f32.mrf.mxu0
    %243 = vdwg.mxu0
    %v244 = vxor.u32 %v230, 2147483648
    %v245 = vxor.u32 %v233, 2147483648
    %v246 = vxor.u32 %v238, 2147483648
    %v247 = vxor.u32 %v241, 2147483648
    %v248 = vmul.f32 %v244, 1.442695
    %v249 = vpow.pop %v248
    %v250 = vmul.f32 %v245, 1.442695
    %v251 = vpow.pop %v250
    %v252 = vmul.f32 %v246, 1.442695
    %v253 = vpow.pop %v252
    %v254 = vmul.f32 %v247, 1.442695
    %v255 = vpow.pop %v254
    %v256 = vadd.f32 %v249, 1.0
    %v257 = vadd.f32 %v251, 1.0
    %v258 = vadd.f32 %v253, 1.0
    %v259 = vadd.f32 %v255, 1.0
    %v260 = vrcp.pop %v256
    %v261 = vmul.f32 1.0, %v260
    %v262 = vrcp.pop %v257
    %v263 = vmul.f32 1.0, %v262
    %v264 = vrcp.pop %v258
    %v265 = vmul.f32 1.0, %v264
    %v266 = vrcp.pop %v259
    %v267 = vmul.f32 1.0, %v266
    %v268 = vmul.f32 %v230, %v261
    %v269 = vmul.f32 %v233, %v263
    %v270 = vmul.f32 %v238, %v265
    %v271 = vmul.f32 %v241, %v267
    %v272 = vld [vmem:[%s6] sm:$0xff]
    %v273 = vld [vmem:[%s6 + $0x8] sm:$0xff]
    %v274 = vld [vmem:[%s6 + $0x10] sm:$0xff]
    %v275 = vld [vmem:[%s6 + $0x18] sm:$0xff]
    %277 = vset.pattern.permute.xlu0 0
    %278 = vperm.xlu0 %277, %v272
    %v279 = vpop.permute.xlu0 %278
    %282 = vset.pattern.permute.xlu0 0
    %283 = vperm.xlu0 %282, %v273
    %v284 = vpop.permute.xlu0 %283
    %287 = vset.pattern.permute.xlu0 0
    %288 = vperm.xlu0 %287, %v274
    %v289 = vpop.permute.xlu0 %288
    %292 = vset.pattern.permute.xlu0 0
    %293 = vperm.xlu0 %292, %v275
    %v294 = vpop.permute.xlu0 %293
    %v296 = vmul.f32 %v268, %v279
    %v297 = vmul.f32 %v269, %v284
    %v298 = vmul.f32 %v270, %v289
    %v299 = vmul.f32 %v271, %v294
    %v300 = vadd.f32 %v296, %v297
    %v301 = vadd.f32 %v300, %v298
    %v302 = vadd.f32 %v301, %v299
    %v303 = vrot.slane %v302, 4
    %v304 = vadd.f32 %v302, %v303
    %v305 = vrot.slane %v304, 2
    %v306 = vadd.f32 %v304, %v305
    %v307 = vrot.slane %v306, 1
    %v308 = vadd.f32 %v306, %v307
    %v309 = vld [vmem:[%s81 + $0x3] sm:$0x1]
    %v310 = vmul.f32 %v308, %v309
    %v311 = vld [vmem:[%s81] sm:$0x7]
    %v312 = vlaneseq
    %v313 = vshrl.u32 %v312, 7
    %v314 = vsub.s32 0, %v313
    %v315 = vrot.slane %v310, %v314
    %v316 = vmul.f32 %v311, %v315
    %v317 = vld [vmem:[%s81 + $0x4] sm:$0x1]
    %v319 = vrot.slane %v317, 5
    %vm321 = vcmask 1042432
    %v322 = vsel %vm321, %v316, %v319
    %v323 = vlaneseq
    %v324 = vand.u32 %v323, 127
    %v325 = vld [vmem:[%s68] sm:$0xff]
    %v326 = vld [vmem:[%s68 + $0x8] sm:$0xff]
    %v327 = vld [vmem:[%s68 + $0x10] sm:$0xff]
    %v328 = vld [vmem:[%s68 + $0x18] sm:$0xff]
    %v329 = vld [vmem:[%s68 + $0x20] sm:$0xff]
    %v330 = vld [vmem:[%s68 + $0x28] sm:$0xff]
    %v331 = vld [vmem:[%s68 + $0x30] sm:$0xff]
    %v332 = vld [vmem:[%s68 + $0x38] sm:$0xff]
    %v333 = vld [vmem:[%s68 + $0x40] sm:$0xff]
    %v334 = vld [vmem:[%s68 + $0x48] sm:$0xff]
    %v335 = vld [vmem:[%s68 + $0x50] sm:$0xff]
    %v336 = vld [vmem:[%s68 + $0x58] sm:$0xff]
    %v337 = vld [vmem:[%s68 + $0x60] sm:$0xff]
    %v338 = vld [vmem:[%s68 + $0x68] sm:$0xff]
    %v339 = vld [vmem:[%s68 + $0x70] sm:$0xff]
    %v340 = vld [vmem:[%s68 + $0x78] sm:$0xff]
    %341 = vset.pattern.permute.xlu0 0
    %342 = vperm.xlu0 %341, %v325
    %v343 = vpop.permute.xlu0 %342
    %344 = vset.pattern.permute.xlu0 0
    %345 = vperm.xlu0 %344, %v326
    %v346 = vpop.permute.xlu0 %345
    %347 = vset.pattern.permute.xlu0 0
    %348 = vperm.xlu0 %347, %v327
    %v349 = vpop.permute.xlu0 %348
    %350 = vset.pattern.permute.xlu0 0
    %351 = vperm.xlu0 %350, %v328
    %v352 = vpop.permute.xlu0 %351
    %353 = vset.pattern.permute.xlu0 0
    %354 = vperm.xlu0 %353, %v329
    %v355 = vpop.permute.xlu0 %354
    %356 = vset.pattern.permute.xlu0 0
    %357 = vperm.xlu0 %356, %v330
    %v358 = vpop.permute.xlu0 %357
    %359 = vset.pattern.permute.xlu0 0
    %360 = vperm.xlu0 %359, %v331
    %v361 = vpop.permute.xlu0 %360
    %362 = vset.pattern.permute.xlu0 0
    %363 = vperm.xlu0 %362, %v332
    %v364 = vpop.permute.xlu0 %363
    %365 = vset.pattern.permute.xlu0 0
    %366 = vperm.xlu0 %365, %v333
    %v367 = vpop.permute.xlu0 %366
    %368 = vset.pattern.permute.xlu0 0
    %369 = vperm.xlu0 %368, %v334
    %v370 = vpop.permute.xlu0 %369
    %371 = vset.pattern.permute.xlu0 0
    %372 = vperm.xlu0 %371, %v335
    %v373 = vpop.permute.xlu0 %372
    %374 = vset.pattern.permute.xlu0 0
    %375 = vperm.xlu0 %374, %v336
    %v376 = vpop.permute.xlu0 %375
    %377 = vset.pattern.permute.xlu0 0
    %378 = vperm.xlu0 %377, %v337
    %v379 = vpop.permute.xlu0 %378
    %380 = vset.pattern.permute.xlu0 0
    %381 = vperm.xlu0 %380, %v338
    %v382 = vpop.permute.xlu0 %381
    %383 = vset.pattern.permute.xlu0 0
    %384 = vperm.xlu0 %383, %v339
    %v385 = vpop.permute.xlu0 %384
    %386 = vset.pattern.permute.xlu0 0
    %387 = vperm.xlu0 %386, %v340
    %v388 = vpop.permute.xlu0 %387
    %vm389 = vcmp.eq.s32.totalorder %v324, %v343
    %vm390 = vcmp.eq.s32.totalorder %v324, %v346
    %vm391 = vcmp.eq.s32.totalorder %v324, %v349
    %vm392 = vcmp.eq.s32.totalorder %v324, %v352
    %vm393 = vcmp.eq.s32.totalorder %v324, %v355
    %vm394 = vcmp.eq.s32.totalorder %v324, %v358
    %vm395 = vcmp.eq.s32.totalorder %v324, %v361
    %vm396 = vcmp.eq.s32.totalorder %v324, %v364
    %vm397 = vcmp.eq.s32.totalorder %v324, %v367
    %vm398 = vcmp.eq.s32.totalorder %v324, %v370
    %vm399 = vcmp.eq.s32.totalorder %v324, %v373
    %vm400 = vcmp.eq.s32.totalorder %v324, %v376
    %vm401 = vcmp.eq.s32.totalorder %v324, %v379
    %vm402 = vcmp.eq.s32.totalorder %v324, %v382
    %vm403 = vcmp.eq.s32.totalorder %v324, %v385
    %vm404 = vcmp.eq.s32.totalorder %v324, %v388
    %v405 = vsel %vm389, 1, 0
    %v406 = vsel %vm390, 1, 0
    %v407 = vsel %vm391, 1, 0
    %v408 = vsel %vm392, 1, 0
    %v409 = vsel %vm393, 1, 0
    %v410 = vsel %vm394, 1, 0
    %v411 = vsel %vm395, 1, 0
    %v412 = vsel %vm396, 1, 0
    %v413 = vsel %vm397, 1, 0
    %v414 = vsel %vm398, 1, 0
    %v415 = vsel %vm399, 1, 0
    %v416 = vsel %vm400, 1, 0
    %v417 = vsel %vm401, 1, 0
    %v418 = vsel %vm402, 1, 0
    %v419 = vsel %vm403, 1, 0
    %v420 = vsel %vm404, 1, 0
    %v421 = vcvt.s32.f32 %v405
    %v422 = vcvt.s32.f32 %v406
    %v423 = vcvt.s32.f32 %v407
    %v424 = vcvt.s32.f32 %v408
    %v425 = vcvt.s32.f32 %v409
    %v426 = vcvt.s32.f32 %v410
    %v427 = vcvt.s32.f32 %v411
    %v428 = vcvt.s32.f32 %v412
    %v429 = vcvt.s32.f32 %v413
    %v430 = vcvt.s32.f32 %v414
    %v431 = vcvt.s32.f32 %v415
    %v432 = vcvt.s32.f32 %v416
    %v433 = vcvt.s32.f32 %v417
    %v434 = vcvt.s32.f32 %v418
    %v435 = vcvt.s32.f32 %v419
    %v436 = vcvt.s32.f32 %v420
    %v437 = vpack.c.bf16 %v422, %v421
    %v438 = vpack.c.bf16 %v424, %v423
    %v439 = vpack.c.bf16 %v426, %v425
    %v440 = vpack.c.bf16 %v428, %v427
    %v441 = vpack.c.bf16 %v430, %v429
    %v442 = vpack.c.bf16 %v432, %v431
    %v443 = vpack.c.bf16 %v434, %v433
    %v444 = vpack.c.bf16 %v436, %v435
    %v445 = vpack.c.bf16 %v322, %v322
    %446 = vmatprep.subr.bf16.mxu0 0
    %447 = vmatpush1.bf16.msra.mxu0 %v444
    %448 = vmatprep.subr.bf16.mxu0 0
    %449 = vmatpush1.bf16.msra.mxu0 %v443
    %450 = vmatprep.subr.bf16.mxu0 0
    %451 = vmatpush1.bf16.msra.mxu0 %v442
    %452 = vmatprep.subr.bf16.mxu0 0
    %453 = vmatpush1.bf16.msra.mxu0 %v441
    %454 = vmatprep.subr.bf16.mxu0 0
    %455 = vmatpush1.bf16.msra.mxu0 %v440
    %456 = vmatprep.subr.bf16.mxu0 0
    %457 = vmatpush1.bf16.msra.mxu0 %v439
    %458 = vmatprep.subr.bf16.mxu0 0
    %459 = vmatpush1.bf16.msra.mxu0 %v438
    %460 = vmatprep.subr.bf16.mxu0 0
    %461 = vmatpush1.bf16.msra.mxu0 %v437
    %462 = vmatprep.subr.bf16.mxu0 0
    %463 = vmatpush2.bf16.msra.mxu0 0
    %464 = vmatprep.subr.bf16.mxu0 0
    %465 = vmatpush2.bf16.msra.mxu0 0
    %466 = vmatprep.subr.bf16.mxu0 0
    %467 = vmatpush2.bf16.msra.mxu0 0
    %468 = vmatprep.subr.bf16.mxu0 0
    %469 = vmatpush2.bf16.msra.mxu0 0
    %470 = vmatprep.subr.bf16.mxu0 0
    %471 = vmatpush2.bf16.msra.mxu0 0
    %472 = vmatprep.subr.bf16.mxu0 0
    %473 = vmatpush2.bf16.msra.mxu0 0
    %474 = vmatprep.subr.bf16.mxu0 0
    %475 = vmatpush2.bf16.msra.mxu0 0
    %476 = vmatprep.subr.bf16.mxu0 0
    %477 = vmatpush2.bf16.msra.mxu0 0
    %478 = vmatprep.mubr.bf16.mxu0 0
    %479 = vmatmul.mubr.bf16.gmra.mxu0 %v445
    %v480 = vpop.f32.mrf.mxu0
    %v481 = vadd.f32 0.0, %v480
    %v482 = vpop.f32.mrf.mxu0
    %v483 = vpop.f32.mrf.mxu0
    %v484 = vpop.f32.mrf.mxu0
    %485 = vdwg.mxu0
    %p486 = scmp.eq.s32.totalorder 0, 0
    // Predicated region
    $region30: #{tpu_custom_call.1} parent=1 // pred_check
      %p487 = pneg %p486
    $region31: #{tpu_custom_call.1} parent=1 // pred_check_branch
      %489 = sbr.rel (%p487) target = $region33
    $region32: #{tpu_custom_call.1} parent=1 // pred_region
      %490 = vst [vmem:[#allocation2] sm:$0xf] %v481
    $region33: #{tpu_custom_call.1} parent=1 // pred_fallthru
      _
    %p491 = scmp.ne.s32.totalorder 0, 0
    // Predicated region
    $region34: #{tpu_custom_call.1} parent=1 // pred_check
      %p492 = pneg %p491
    $region35: #{tpu_custom_call.1} parent=1 // pred_check_branch
      %494 = sbr.rel (%p492) target = $region37
    $region36: #{tpu_custom_call.1} parent=1 // pred_region
      %v495 = vld [vmem:[#allocation2] sm:$0xf]
      %v496 = vadd.f32 %v495, %v481
      %497 = vst [vmem:[#allocation2] sm:$0xf] %v496
    $region37: #{tpu_custom_call.1} parent=1 // pred_fallthru
      _
    // Predicated region
    $region38: #{tpu_custom_call.1} parent=1 // pred_check
      _
    $region39: #{tpu_custom_call.1} parent=1 // pred_check_branch
      %499 = sbr.rel (0) target = $region41
    $region40: #{tpu_custom_call.1} parent=1 // pred_region
      %s501 = ssub.s32 64, 64
      %502 = vsyncadd [#allocation3], %s501
      %s504 = sshll.u32 [#allocation2], 4
      %s505 = int_to_ptr.vmem [resolvable:$true] %s504
      %507 = dma.vmem_to_hbm [thread:$0]  %s505, 64, %s7, [#allocation3]
    $region41: #{tpu_custom_call.1} parent=1 // pred_fallthru
      _
    // Predicated region
    $region42: #{tpu_custom_call.1} parent=1 // pred_check
      _
    $region43: #{tpu_custom_call.1} parent=1 // pred_check_branch
      %509 = sbr.rel (0) target = $region45
    $region44: #{tpu_custom_call.1} parent=1 // pred_region
      %510 = dma.done [#allocation3], 64
    $region45: #{tpu_custom_call.1} parent=1 // pred_fallthru
      _
    %511 = vsyncpa [#allocation3], 1

</llo_original>
